<compile_context>
chip_gen: v5e
topology: v5e:2x2
jax: 0.10.0
libtpu: 0.0.40
codegen_flags: <defaults>
</compile_context>

<pallas_src>
import jax
import jax.numpy as jnp
from jax.experimental import pallas as pl
from jax.experimental.pallas import tpu as pltpu


def _round_up(x, m):
    return (x + m - 1) // m * m


def _largest_divisor(total, candidates):
    for c in candidates:
        if c <= total and total % c == 0:
            return c
    return total


# ---------------- kernels ----------------

def _pe_kernel_single(lhs_ref, w_ref, b_ref, o_ref):
    # lhs_ref: (1, TM, Kp)   im2col activations for one (n, m) tile
    # w_ref:   (Kp, TN)      fused conv-weight slab
    # b_ref:   (1, TN)       bias (f32, zero-padded)
    # o_ref:   (1, TM, TN)   lane-dense output tile
    o_ref[0] = (jnp.dot(lhs_ref[0], w_ref[...],
                        preferred_element_type=jnp.float32)
                + b_ref[...]).astype(o_ref.dtype)


def _pe_kernel_multi(lhs_ref, w_ref, b_ref, o_ref, acc_ref):
    # Same as above but with a K-reduction grid axis (axis 3) and an f32
    # VMEM accumulator for large 27*C.
    @pl.when(pl.program_id(3) == 0)
    def _():
        acc_ref[...] = jnp.zeros_like(acc_ref)

    acc_ref[...] += jnp.dot(lhs_ref[0], w_ref[...],
                            preferred_element_type=jnp.float32)

    @pl.when(pl.program_id(3) == pl.num_programs(3) - 1)
    def _():
        o_ref[0] = (acc_ref[...] + b_ref[...]).astype(o_ref.dtype)


# ---------------- wrapper ----------------

def patch_embed_forward(x_nchwd, weight_oihwd, bias, *, compute_dtype=None):
    """x_nchwd: (N, C, H, W, D); weight: (Cout, C, 3, 3, 3); bias: (Cout,).
    Returns (N, H*W*D, Cout), matching PyTorch's x.flatten(2).transpose(1, 2).

    compute_dtype: optionally cast activations/weights (e.g. jnp.bfloat16) for
    the MXU on v6e/v7x; accumulation and bias add stay in f32."""
    N, C, H, W, D = x_nchwd.shape
    Cout = weight_oihwd.shape[0]
    HWD = H * W * D
    K = 27 * C

    # ---- wrapper-side layout glue (runs once, outside the hot loop) ----
    # channels-last + spatial zero padding (conv padding=1)
    x_cl = jnp.transpose(x_nchwd, (0, 2, 3, 4, 1))               # (N, H, W, D, C)
    x_pad = jnp.pad(x_cl, ((0, 0), (1, 1), (1, 1), (1, 1), (0, 0)))
    # im2col: 27 shifted windows concatenated on the channel dim -> lane-dense K
    patches = []
    for kh in range(3):
        for kw in range(3):
            for kd in range(3):
                patches.append(x_pad[:, kh:kh + H, kw:kw + W, kd:kd + D, :])
    lhs = jnp.concatenate(patches, axis=-1).reshape(N, HWD, K)   # (N, HWD, 27*C)

    # weight -> (kh, kw, kd, C, Cout) -> (27*C, Cout); matches the concat order
    w = jnp.transpose(weight_oihwd, (2, 3, 4, 1, 0)).reshape(K, Cout)

    Kp = _round_up(K, 128)
    Coutp = _round_up(Cout, 128)

    out_dtype = x_nchwd.dtype
    lhs_dtype = compute_dtype if compute_dtype is not None else lhs.dtype
    itemsize = jnp.dtype(lhs_dtype).itemsize
    out_itemsize = jnp.dtype(out_dtype).itemsize

    # ---- tiling ----
    TN = _largest_divisor(Coutp, (512, 256, 128))     # output-channel (lane) tile
    single_k = Kp <= 1024                              # common PatchEmbed case
    TK = Kp if single_k else _largest_divisor(Kp, (512, 256, 128))

    # spatial (sublane) tile, chosen against a VMEM budget (double-buffered)
    TM = 512 if HWD >= 512 else _round_up(HWD, 8)

    def _vmem_est(tm):
        e = (2 * tm * TK * itemsize          # lhs double buffer
             + 2 * TK * TN * itemsize        # weight double buffer
             + 2 * TN * 4                    # bias
             + 2 * tm * TN * out_itemsize)   # output double buffer
        if not single_k:
            e += tm * TN * 4                 # f32 accumulator scratch
        return e

    budget = 24 * 1024 * 1024
    while TM > 8 and _vmem_est(TM) > budget:
        new_tm = max(8, _round_up(TM // 2, 8))
        if new_tm == TM:
            break
        TM = new_tm

    Mp = _round_up(HWD, TM)

    # zero-pad M, K, Cout so every tile is full and stores are unmasked
    lhs = jnp.pad(lhs, ((0, 0), (0, Mp - HWD), (0, Kp - K)))
    w = jnp.pad(w, ((0, Kp - K), (0, Coutp - Cout)))
    b = jnp.pad(bias.astype(jnp.float32), (0, Coutp - Cout)).reshape(1, Coutp)

    if compute_dtype is not None:
        lhs = lhs.astype(compute_dtype)
        w = w.astype(compute_dtype)

    if single_k:
        grid = (N, Mp // TM, Coutp // TN)
        out_p = pl.pallas_call(
            _pe_kernel_single,
            out_shape=jax.ShapeDtypeStruct((N, Mp, Coutp), out_dtype),
            grid_spec=pltpu.PrefetchScalarGridSpec(
                num_scalar_prefetch=0,
                grid=grid,
                in_specs=[
                    pl.BlockSpec((1, TM, Kp), lambda n, i, j: (n, i, 0)),
                    pl.BlockSpec((Kp, TN), lambda n, i, j: (0, j)),
                    pl.BlockSpec((1, TN), lambda n, i, j: (0, j)),
                ],
                out_specs=pl.BlockSpec((1, TM, TN), lambda n, i, j: (n, i, j)),
            ),
            compiler_params=pltpu.CompilerParams(
                dimension_semantics=("parallel", "parallel", "parallel"),
                vmem_limit_bytes=32 * 1024 * 1024),
        )(lhs, w, b)
    else:
        grid = (N, Mp // TM, Coutp // TN, Kp // TK)
        out_p = pl.pallas_call(
            _pe_kernel_multi,
            out_shape=jax.ShapeDtypeStruct((N, Mp, Coutp), out_dtype),
            grid_spec=pltpu.PrefetchScalarGridSpec(
                num_scalar_prefetch=0,
                grid=grid,
                in_specs=[
                    pl.BlockSpec((1, TM, TK), lambda n, i, j, k: (n, i, k)),
                    pl.BlockSpec((TK, TN), lambda n, i, j, k: (k, j)),
                    pl.BlockSpec((1, TN), lambda n, i, j, k: (0, j)),
                ],
                out_specs=pl.BlockSpec((1, TM, TN),
                                       lambda n, i, j, k: (n, i, j)),
                scratch_shapes=[pltpu.VMEM((TM, TN), jnp.float32)],
            ),
            compiler_params=pltpu.CompilerParams(
                dimension_semantics=("parallel", "parallel", "parallel",
                                     "arbitrary"),
                vmem_limit_bytes=32 * 1024 * 1024),
        )(lhs, w, b)

    return out_p[:, :HWD, :Cout]


def reference_forward(x_nchwd, weight_oihwd, bias):
    """Pure-JAX reference matching the PyTorch module semantics."""
    y = jax.lax.conv_general_dilated(
        x_nchwd, weight_oihwd,
        window_strides=(1, 1, 1),
        padding=((1, 1), (1, 1), (1, 1)),
        dimension_numbers=("NCHWD", "OIHWD", "NCHWD"),
    )
    y = y + bias.reshape(1, -1, 1, 1, 1)
    N, Cout = y.shape[0], y.shape[1]
    return jnp.transpose(y.reshape(N, Cout, -1), (0, 2, 1))


if __name__ == "__main__":
    key = jax.random.PRNGKey(0)

    # Case 1: small shapes consistent with the module's forward (aligned-ish).
    N, C, H, W, D = 2, 4, 8, 8, 8
    Cout = 32
    kx, kw, kb = jax.random.split(key, 3)
    x = jax.random.normal(kx, (N, C, H, W, D), jnp.float32)
    weight = jax.random.normal(kw, (Cout, C, 3, 3, 3), jnp.float32) * 0.1
    bias = jax.random.normal(kb, (Cout,), jnp.float32) * 0.1

    ref = reference_forward(x, weight, bias)

    # f32 path (strict tolerance)
    out = patch_embed_forward(x, weight, bias)
    out = jax.block_until_ready(out)
    assert out.shape == (N, H * W * D, Cout), out.shape
    assert jnp.allclose(out, ref, atol=1e-4, rtol=1e-4), (
        float(jnp.max(jnp.abs(out - ref))))

    # bf16 MXU path (v6e/v7x fast path; loose tolerance)
    out_bf16 = patch_embed_forward(x, weight, bias, compute_dtype=jnp.bfloat16)
    out_bf16 = jax.block_until_ready(out_bf16)
    assert jnp.allclose(out_bf16, ref, atol=5e-2, rtol=5e-2), (
        float(jnp.max(jnp.abs(out_bf16 - ref))))

    # Case 2: deliberately unaligned shapes to exercise M/K/Cout padding.
    N2, C2, H2, W2, D2, Cout2 = 1, 3, 5, 5, 5, 20
    kx2, kw2, kb2 = jax.random.split(jax.random.PRNGKey(1), 3)
    x2 = jax.random.normal(kx2, (N2, C2, H2, W2, D2), jnp.float32)
    weight2 = jax.random.normal(kw2, (Cout2, C2, 3, 3, 3), jnp.float32) * 0.1
    bias2 = jax.random.normal(kb2, (Cout2,), jnp.float32) * 0.1
    ref2 = reference_forward(x2, weight2, bias2)
    out2 = jax.block_until_ready(patch_embed_forward(x2, weight2, bias2))
    assert out2.shape == (N2, H2 * W2 * D2, Cout2), out2.shape
    assert jnp.allclose(out2, ref2, atol=1e-4, rtol=1e-4), (
        float(jnp.max(jnp.abs(out2 - ref2))))

    print("KERNEL_OK")
</pallas_src>

<mosaic_0001>
module attributes {stable_mosaic.version = 11 : i64} {
  func.func @_pe_kernel_single(%arg0: i32, %arg1: i32, %arg2: i32, %arg3: memref<1x512x128xf32, #tpu.memory_space<vmem>>, %arg4: memref<128x128xf32, #tpu.memory_space<vmem>>, %arg5: memref<1x128xf32, #tpu.memory_space<vmem>>, %arg6: memref<1x512x128xf32, #tpu.memory_space<vmem>>) attributes {dimension_semantics = [#tpu.dimension_semantics<parallel>, #tpu.dimension_semantics<parallel>, #tpu.dimension_semantics<parallel>], iteration_bounds = array<i64: 2, 1, 1>, scalar_prefetch = 0 : i64, scratch_operands = 0 : i64, tpu.core_type = #tpu.core_type<tc>, window_params = [{transform_indices = @transform_0, window_bounds = array<i64: 1, 512, 128>}, {transform_indices = @transform_1, window_bounds = array<i64: 128, 128>}, {transform_indices = @transform_2, window_bounds = array<i64: 1, 128>}, {transform_indices = @transform_3, window_bounds = array<i64: 1, 512, 128>}]} {
    %c0 = arith.constant 0 : index
    %c0_0 = arith.constant 0 : index
    %c0_1 = arith.constant 0 : index
    %0 = vector.load %arg3[%c0, %c0_0, %c0_1] : memref<1x512x128xf32, #tpu.memory_space<vmem>>, vector<1x512x128xf32>
    %1 = vector.shape_cast %0 : vector<1x512x128xf32> to vector<512x128xf32>
    %c0_2 = arith.constant 0 : index
    %c0_3 = arith.constant 0 : index
    %2 = vector.load %arg4[%c0_2, %c0_3] : memref<128x128xf32, #tpu.memory_space<vmem>>, vector<128x128xf32>
    %cst = arith.constant dense<0.000000e+00> : vector<512x128xf32>
    %3 = tpu.matmul %1, %2, %cst {dimension_numbers = #tpu.dot_dimension_numbers<[1], [0], [0], [1], [0, 0, 1, 1], [], []>} : vector<512x128xf32>, vector<128x128xf32>, vector<512x128xf32> -> vector<512x128xf32>
    %c0_4 = arith.constant 0 : index
    %c0_5 = arith.constant 0 : index
    %4 = vector.load %arg5[%c0_4, %c0_5] : memref<1x128xf32, #tpu.memory_space<vmem>>, vector<1x128xf32>
    %5 = vector.broadcast %4 : vector<1x128xf32> to vector<512x128xf32>
    %6 = arith.addf %3, %5 : vector<512x128xf32>
    %c0_6 = arith.constant 0 : index
    %c0_7 = arith.constant 0 : index
    %c0_8 = arith.constant 0 : index
    %7 = vector.load %arg6[%c0_6, %c0_7, %c0_8] : memref<1x512x128xf32, #tpu.memory_space<vmem>>, vector<1x512x128xf32>
    %8 = vector.shape_cast %7 : vector<1x512x128xf32> to vector<512x128xf32>
    %9 = vector.shape_cast %6 : vector<512x128xf32> to vector<1x512x128xf32>
    tpu.vector_store %arg6[%c0_6, %c0_7, %c0_8], %9 {strides = array<i32>} : memref<1x512x128xf32, #tpu.memory_space<vmem>>, vector<1x512x128xf32>,
    return
  }
  func.func @transform_0(%arg0: i32, %arg1: i32, %arg2: i32) -> (i32, i32, i32) {
    %c0_i32 = arith.constant 0 : i32
    %c0_i32_0 = arith.constant 0 : i32
    return %arg0, %arg1, %c0_i32 : i32, i32, i32
  }
  func.func @transform_1(%arg0: i32, %arg1: i32, %arg2: i32) -> (i32, i32) {
    %c0_i32 = arith.constant 0 : i32
    %c0_i32_0 = arith.constant 0 : i32
    return %c0_i32, %arg2 : i32, i32
  }
  func.func @transform_2(%arg0: i32, %arg1: i32, %arg2: i32) -> (i32, i32) {
    %c0_i32 = arith.constant 0 : i32
    %c0_i32_0 = arith.constant 0 : i32
    return %c0_i32, %arg2 : i32, i32
  }
  func.func @transform_3(%arg0: i32, %arg1: i32, %arg2: i32) -> (i32, i32, i32) {
    %c0_i32 = arith.constant 0 : i32
    return %arg0, %arg1, %arg2 : i32, i32, i32
  }
}

</mosaic_0001>

<llo_original>
// kernel: tpu_custom_call.1
$region0: #{tpu_custom_call.1}
  #allocation0 [shape = 'u32[]', space=smem, size = 0x4, offset = 0x4, fixed_abs, tag = 'smem constant byte address 0x4 - core index']
  #allocation1 [shape = 'u32[72,128]{1,0:T(1,128)}', space=vmem, size = 0x9000, scoped, tag = 'internal scratch']
  %s0 = inlined_call_operand.hbm [shape: f32[2,512,128], index: 0, kind: input, shape index: {}]
  %s1 = inlined_call_operand.hbm [shape: f32[128,128], index: 1, kind: input, shape index: {}]
  %s2 = inlined_call_operand.vmem [shape: f32[1,128], index: 2, kind: input, shape index: {}]
  %s3 = inlined_call_operand.hbm [shape: f32[2,512,128], index: 3, kind: output, shape index: {}]
  %s4 = sld [smem:[#allocation0]]
  $region53: #{tpu_custom_call.1} parent=0
    _
  %s6 = ssub.s32 1, %s4
  %s7 = scalar_select 0, %s6, %s4
  $region1: #{tpu_custom_call.1} parent=0
    #allocation2 [shape = 'u8[524288]{0}', space=vmem, size = 0x80000, scoped, tag = 'input window, operand 0']
    #allocation3 [shape = 's32[2]{0}', space=sflag, size = 0x8, scoped, tag = 'scoped memory for tpu_custom_call.1']
    #allocation4 [shape = 's32[2]{0}', space=sflag, size = 0x8, scoped, tag = 'scoped memory for tpu_custom_call.1']
    #allocation5 [shape = 'u8[65536]{0}', space=vmem, size = 0x10000, scoped, tag = 'input window, operand 1, single buffered']
    #allocation6 [shape = 's32[1]{0}', space=sflag, size = 0x4, scoped, tag = 'scoped memory for tpu_custom_call.1']
    #allocation7 [shape = 'u8[524288]{0}', space=vmem, size = 0x80000, scoped, tag = 'output window, operand 0']
    %8 = vsyncpa [#allocation3], 0
    %s9 = scalar_lea.sflag [#allocation3], 1
    %10 = vsyncpa %s9, 0
    %11 = vsyncpa [#allocation6], 0
    %12 = vsyncpa [#allocation4], 0
    %s13 = scalar_lea.sflag [#allocation4], 1
    %14 = vsyncpa %s13, 0
    loop: start=0, step=1, limit=4
    $region2: #{tpu_custom_call.1} parent=1 // loop_pre_header
      _
    $region3: #{tpu_custom_call.1} parent=1 // loop_header
      %s16 = sphi 0, %s20
      %p17 = scmp.ge.s32.totalorder %s16, 4
      %s23 = sphi 0, %s42
      %s24 = sphi 0, %s38
      %s25 = sphi 0, %s34
      %s26 = sphi 0, %s23
      %s27 = sphi 0, %s24
      %s28 = sphi 0, %s25
      %s29 = sphi 0, %s26
      %s30 = sphi 0, %s27
      %s31 = sphi 0, %s28
      %s47 = sphi 0, %s49
      %s50 = sphi 0, %s47
      %s51 = sphi 0, %s50
      %s67 = sphi 0, %s51
      %s73 = sphi 0, %s75
      %s76 = sphi 0, %s73
      %s77 = sphi 0, %s76
      %s93 = sphi 0, %s77
      %s99 = sphi 0, %s101
      %s102 = sphi 0, %s99
      %s103 = sphi 0, %s102
      %s119 = sphi 0, %s103
      %s129 = sphi 0, %s131
      %s132 = sphi 0, %s129
      %s133 = sphi 0, %s132
      %s149 = sphi 0, %s133
    $region4: #{tpu_custom_call.1} parent=1 // loop_header_branch
      %19 = sbr.rel (%p17) target = $region8
    $region5: #{tpu_custom_call.1} parent=1 // loop_body
      %s21 = ssub.s32 %s16, 1
      %s22 = ssub.s32 %s16, 2
      %s32 = sadd.s32 1, %s25
      %p33 = scmp.ge.s32.totalorder %s32, 1
      %s34 = scalar_select %p33, 0, %s32
      %s35 = sadd.s32 1, %s24
      %s36 = scalar_select %p33, %s35, %s24
      %p37 = scmp.ge.s32.totalorder %s36, 1
      %s38 = scalar_select %p37, 0, %s36
      %s39 = sadd.s32 1, %s23
      %s40 = scalar_select %p37, %s39, %s23
      %p41 = scmp.ge.s32.totalorder %s40, 2
      %s42 = scalar_select %p41, 0, %s40
      %s43 = ssub.s32 %s23, %s42
      %s44 = ssub.s32 %s24, %s38
      %s45 = sor.u32 %s43, %s44
      %p46 = scmp.eq.s32.totalorder %s45, 0
      %s48 = sadd.s32 %s47, 1
      %s49 = scalar_select %p46, %s47, %s48
      %p52 = pneg %p46
      %p53 = scmp.eq.s32.totalorder %s16, 1
      %p54 = por %p52, %p53
      %p55 = scmp.ne.s32.totalorder %s47, %s50
      %p56 = scmp.eq.s32.totalorder %s16, 0
      %p57 = por %p55, %p56
      %p58 = scmp.ne.s32.totalorder %s47, %s50
      %p59 = scmp.eq.s32.totalorder %s21, 1
      %p60 = por %p58, %p59
      %p61 = scmp.ne.s32.totalorder %s50, %s51
      %p62 = scmp.eq.s32.totalorder %s21, 0
      %p63 = por %p61, %p62
      %p64 = scmp.ne.s32.totalorder %s50, %s51
      %p65 = scmp.eq.s32.totalorder %s22, 1
      %p66 = por %p64, %p65
      %p68 = scmp.ne.s32.totalorder %s51, %s67
      %p69 = scmp.eq.s32.totalorder %s22, 0
      %p70 = por %p68, %p69
      %s71 = ssub.s32 %s25, %s34
      %p72 = scmp.eq.s32.totalorder %s71, 0
      %s74 = sadd.s32 %s73, 1
      %s75 = scalar_select %p72, %s73, %s74
      %p78 = pneg %p72
      %p79 = scmp.eq.s32.totalorder %s16, 1
      %p80 = por %p78, %p79
      %p81 = scmp.ne.s32.totalorder %s73, %s76
      %p82 = scmp.eq.s32.totalorder %s16, 0
      %p83 = por %p81, %p82
      %p84 = scmp.ne.s32.totalorder %s73, %s76
      %p85 = scmp.eq.s32.totalorder %s21, 1
      %p86 = por %p84, %p85
      %p87 = scmp.ne.s32.totalorder %s76, %s77
      %p88 = scmp.eq.s32.totalorder %s21, 0
      %p89 = por %p87, %p88
      %p90 = scmp.ne.s32.totalorder %s76, %s77
      %p91 = scmp.eq.s32.totalorder %s22, 1
      %p92 = por %p90, %p91
      %p94 = scmp.ne.s32.totalorder %s77, %s93
      %p95 = scmp.eq.s32.totalorder %s22, 0
      %p96 = por %p94, %p95
      %s97 = ssub.s32 %s25, %s34
      %p98 = scmp.eq.s32.totalorder %s97, 0
      %s100 = sadd.s32 %s99, 1
      %s101 = scalar_select %p98, %s99, %s100
      %p104 = pneg %p98
      %p105 = scmp.eq.s32.totalorder %s16, 1
      %p106 = por %p104, %p105
      %p107 = scmp.ne.s32.totalorder %s99, %s102
      %p108 = scmp.eq.s32.totalorder %s16, 0
      %p109 = por %p107, %p108
      %p110 = scmp.ne.s32.totalorder %s99, %s102
      %p111 = scmp.eq.s32.totalorder %s21, 1
      %p112 = por %p110, %p111
      %p113 = scmp.ne.s32.totalorder %s102, %s103
      %p114 = scmp.eq.s32.totalorder %s21, 0
      %p115 = por %p113, %p114
      %p116 = scmp.ne.s32.totalorder %s102, %s103
      %p117 = scmp.eq.s32.totalorder %s22, 1
      %p118 = por %p116, %p117
      %p120 = scmp.ne.s32.totalorder %s103, %s119
      %p121 = scmp.eq.s32.totalorder %s22, 0
      %p122 = por %p120, %p121
      %s123 = ssub.s32 %s23, %s42
      %s124 = ssub.s32 %s24, %s38
      %s125 = sor.u32 %s123, %s124
      %s126 = ssub.s32 %s25, %s34
      %s127 = sor.u32 %s125, %s126
      %p128 = scmp.eq.s32.totalorder %s127, 0
      %s130 = sadd.s32 %s129, 1
      %s131 = scalar_select %p128, %s129, %s130
      %p134 = pneg %p128
      %p135 = scmp.eq.s32.totalorder %s16, 1
      %p136 = por %p134, %p135
      %p137 = scmp.ne.s32.totalorder %s129, %s132
      %p138 = scmp.eq.s32.totalorder %s16, 0
      %p139 = por %p137, %p138
      %p140 = scmp.ne.s32.totalorder %s129, %s132
      %p141 = scmp.eq.s32.totalorder %s21, 1
      %p142 = por %p140, %p141
      %p143 = scmp.ne.s32.totalorder %s132, %s133
      %p144 = scmp.eq.s32.totalorder %s21, 0
      %p145 = por %p143, %p144
      %p146 = scmp.ne.s32.totalorder %s132, %s133
      %p147 = scmp.eq.s32.totalorder %s22, 1
      %p148 = por %p146, %p147
      %p150 = scmp.ne.s32.totalorder %s133, %s149
      %p151 = scmp.eq.s32.totalorder %s22, 0
      %p152 = por %p150, %p151
      %p153 = scmp.le.s32.totalorder 1, %s16
      %p154 = scmp.lt.s32.totalorder %s16, 3
      %p155 = pnand %p153, %p154
      %p156 = pneg %p155
      // Predicated region
      $region9: #{tpu_custom_call.1} parent=5 // pred_check
        _
      $region10: #{tpu_custom_call.1} parent=5 // pred_check_branch
        %158 = sbr.rel (%p155) target = $region12
      $region11: #{tpu_custom_call.1} parent=5 // pred_region
        %s159 = ssub.s32 %s16, 1
        // Predicated region
        $region13: #{tpu_custom_call.1} parent=11 // pred_check
          %p160 = pneg %p89
        $region14: #{tpu_custom_call.1} parent=11 // pred_check_branch
          %162 = sbr.rel (%p160) target = $region16
        $region15: #{tpu_custom_call.1} parent=11 // pred_region
          %164 = vsyncadd [#allocation6], 0
          %s165 = smul.addr %s28, 8
          %s166 = scalar_lea.hbm %s1, %s165
          %s167 = sshll.u32 %s166, 4
          %s168 = int_to_ptr.hbm [resolvable:$true] %s167
          %s169 = sshll.u32 [#allocation5], 4
          %s170 = int_to_ptr.vmem [resolvable:$true] %s169
          %175 = dma.hbm_to_vmem [thread:$0]  %s168, 2048, %s170, [#allocation6], 128, 128, 8
        $region16: #{tpu_custom_call.1} parent=11 // pred_fallthru
          _
        // Predicated region
        $region17: #{tpu_custom_call.1} parent=11 // pred_check
          %p176 = pneg %p115
        $region18: #{tpu_custom_call.1} parent=11 // pred_check_branch
          %178 = sbr.rel (%p176) target = $region20
        $region19: #{tpu_custom_call.1} parent=11 // pred_region
          %p179 = scmp.lt.s32.totalorder %s28, 0
          %s180 = scalar_select %p179, %s28, 0
          %s181 = scalar_lea.vmem %s2, %s180
        $region20: #{tpu_custom_call.1} parent=11 // pred_fallthru
          _
      $region12: #{tpu_custom_call.1} parent=5 // pred_fallthru
        _
      %p182 = scmp.lt.s32.totalorder %s16, 2
      // Predicated region
      $region21: #{tpu_custom_call.1} parent=5 // pred_check
        %p183 = pneg %p182
      $region22: #{tpu_custom_call.1} parent=5 // pred_check_branch
        %185 = sbr.rel (%p183) target = $region24
      $region23: #{tpu_custom_call.1} parent=5 // pred_region
        // Predicated region
        $region25: #{tpu_custom_call.1} parent=23 // pred_check
          %p186 = pneg %p57
        $region26: #{tpu_custom_call.1} parent=23 // pred_check_branch
          %188 = sbr.rel (%p186) target = $region28
        $region27: #{tpu_custom_call.1} parent=23 // pred_region
          %s189 = sand.u32 %s47, 1
          %s190 = scalar_lea.sflag [#allocation3], %s189
          %s191 = sand.u32 %s47, 1
          %s192 = smul.addr %s191, 512
          %s193 = scalar_lea.vmem [#allocation2], %s192
          %s194 = smul.u32 64, %s24
          %196 = vsyncadd %s190, 0
          %s197 = smul.addr %s23, 64
          %s198 = sadd.s32 %s194, %s197
          %s199 = smul.addr %s198, 8
          %s200 = scalar_lea.hbm %s0, %s199
          %s201 = sshll.u32 %s200, 4
          %s202 = int_to_ptr.hbm [resolvable:$true] %s201
          %s203 = sshll.u32 %s193, 4
          %s204 = int_to_ptr.vmem [resolvable:$true] %s203
          %209 = dma.hbm_to_vmem [thread:$0]  %s202, 8192, %s204, %s190, 128, 128, 8
        $region28: #{tpu_custom_call.1} parent=23 // pred_fallthru
          _
      $region24: #{tpu_custom_call.1} parent=5 // pred_fallthru
        _
      %p210 = scmp.le.s32.totalorder 1, %s16
      %p211 = scmp.lt.s32.totalorder %s16, 3
      %p212 = pnand %p210, %p211
      %p213 = pneg %p212
      // Predicated region
      $region29: #{tpu_custom_call.1} parent=5 // pred_check
        _
      $region30: #{tpu_custom_call.1} parent=5 // pred_check_branch
        %215 = sbr.rel (%p212) target = $region32
      $region31: #{tpu_custom_call.1} parent=5 // pred_region
        %s216 = ssub.s32 %s16, 1
        %s217 = sand.u32 %s50, 1
        %s218 = scalar_lea.sflag [#allocation3], %s217
        %s219 = sand.u32 %s50, 1
        %s220 = smul.addr %s219, 512
        %s221 = scalar_lea.vmem [#allocation2], %s220
        // Predicated region
        $region33: #{tpu_custom_call.1} parent=31 // pred_check
          %p222 = pneg %p63
        $region34: #{tpu_custom_call.1} parent=31 // pred_check_branch
          %224 = sbr.rel (%p222) target = $region36
        $region35: #{tpu_custom_call.1} parent=31 // pred_region
          %226 = dma.done %s218, 8192
        $region36: #{tpu_custom_call.1} parent=31 // pred_fallthru
          _
        // Predicated region
        $region37: #{tpu_custom_call.1} parent=31 // pred_check
          %p227 = pneg %p89
        $region38: #{tpu_custom_call.1} parent=31 // pred_check_branch
          %229 = sbr.rel (%p227) target = $region40
        $region39: #{tpu_custom_call.1} parent=31 // pred_region
          %231 = dma.done [#allocation6], 2048
        $region40: #{tpu_custom_call.1} parent=31 // pred_fallthru
          _
        %s232 = sand.u32 %s50, 1
        %s233 = scalar_lea.sflag [#allocation3], %s232
        %s234 = sand.u32 %s50, 1
        %s235 = smul.addr %s234, 512
        %s236 = scalar_lea.vmem [#allocation2], %s235
        %p237 = pneg %p63
        %p238 = pneg %p60
        %p239 = pneg %p89
        %p240 = pneg %p86
        %p241 = scmp.lt.s32.totalorder %s28, 0
        %s242 = scalar_select %p241, %s28, 0
        %s243 = scalar_lea.vmem %s2, %s242
        %p244 = pneg %p115
        %p245 = pneg %p112
        %p246 = pneg %p145
        %p247 = pneg %p142
        %s248 = sand.u32 %s132, 1
        %s249 = scalar_lea.sflag [#allocation4], %s248
        %s250 = sand.u32 %s132, 1
        %s251 = smul.addr %s250, 512
        %s252 = scalar_lea.vmem [#allocation7], %s251
        %s253 = smul.u32 64, %s27
        %p254 = scmp.lt.s32.totalorder %s28, 0
        %s255 = scalar_select %p254, %s28, 0
        %s256 = scalar_lea.vmem %s2, %s255
        %s257 = smul.u32 64, %s27
        %v258 = vld [vmem:[%s221] sm:$0xff]
        %v259 = vld [vmem:[%s221 + $0x8] sm:$0xff]
        %v260 = vld [vmem:[%s221 + $0x10] sm:$0xff]
        %v261 = vld [vmem:[%s221 + $0x18] sm:$0xff]
        %v262 = vld [vmem:[%s221 + $0x20] sm:$0xff]
        %v263 = vld [vmem:[%s221 + $0x28] sm:$0xff]
        %v264 = vld [vmem:[%s221 + $0x30] sm:$0xff]
        %v265 = vld [vmem:[%s221 + $0x38] sm:$0xff]
        %v266 = vld [vmem:[%s221 + $0x40] sm:$0xff]
        %v267 = vld [vmem:[%s221 + $0x48] sm:$0xff]
        %v268 = vld [vmem:[%s221 + $0x50] sm:$0xff]
        %v269 = vld [vmem:[%s221 + $0x58] sm:$0xff]
        %v270 = vld [vmem:[%s221 + $0x60] sm:$0xff]
        %v271 = vld [vmem:[%s221 + $0x68] sm:$0xff]
        %v272 = vld [vmem:[%s221 + $0x70] sm:$0xff]
        %v273 = vld [vmem:[%s221 + $0x78] sm:$0xff]
        %v274 = vld [vmem:[%s221 + $0x80] sm:$0xff]
        %v275 = vld [vmem:[%s221 + $0x88] sm:$0xff]
        %v276 = vld [vmem:[%s221 + $0x90] sm:$0xff]
        %v277 = vld [vmem:[%s221 + $0x98] sm:$0xff]
        %v278 = vld [vmem:[%s221 + $0xa0] sm:$0xff]
        %v279 = vld [vmem:[%s221 + $0xa8] sm:$0xff]
        %v280 = vld [vmem:[%s221 + $0xb0] sm:$0xff]
        %v281 = vld [vmem:[%s221 + $0xb8] sm:$0xff]
        %v282 = vld [vmem:[%s221 + $0xc0] sm:$0xff]
        %v283 = vld [vmem:[%s221 + $0xc8] sm:$0xff]
        %v284 = vld [vmem:[%s221 + $0xd0] sm:$0xff]
        %v285 = vld [vmem:[%s221 + $0xd8] sm:$0xff]
        %v286 = vld [vmem:[%s221 + $0xe0] sm:$0xff]
        %v287 = vld [vmem:[%s221 + $0xe8] sm:$0xff]
        %v288 = vld [vmem:[%s221 + $0xf0] sm:$0xff]
        %v289 = vld [vmem:[%s221 + $0xf8] sm:$0xff]
        %v290 = vld [vmem:[%s221 + $0x100] sm:$0xff]
        %v291 = vld [vmem:[%s221 + $0x108] sm:$0xff]
        %v292 = vld [vmem:[%s221 + $0x110] sm:$0xff]
        %v293 = vld [vmem:[%s221 + $0x118] sm:$0xff]
        %v294 = vld [vmem:[%s221 + $0x120] sm:$0xff]
        %v295 = vld [vmem:[%s221 + $0x128] sm:$0xff]
        %v296 = vld [vmem:[%s221 + $0x130] sm:$0xff]
        %v297 = vld [vmem:[%s221 + $0x138] sm:$0xff]
        %v298 = vld [vmem:[%s221 + $0x140] sm:$0xff]
        %v299 = vld [vmem:[%s221 + $0x148] sm:$0xff]
        %v300 = vld [vmem:[%s221 + $0x150] sm:$0xff]
        %v301 = vld [vmem:[%s221 + $0x158] sm:$0xff]
        %v302 = vld [vmem:[%s221 + $0x160] sm:$0xff]
        %v303 = vld [vmem:[%s221 + $0x168] sm:$0xff]
        %v304 = vld [vmem:[%s221 + $0x170] sm:$0xff]
        %v305 = vld [vmem:[%s221 + $0x178] sm:$0xff]
        %v306 = vld [vmem:[%s221 + $0x180] sm:$0xff]
        %v307 = vld [vmem:[%s221 + $0x188] sm:$0xff]
        %v308 = vld [vmem:[%s221 + $0x190] sm:$0xff]
        %v309 = vld [vmem:[%s221 + $0x198] sm:$0xff]
        %v310 = vld [vmem:[%s221 + $0x1a0] sm:$0xff]
        %v311 = vld [vmem:[%s221 + $0x1a8] sm:$0xff]
        %v312 = vld [vmem:[%s221 + $0x1b0] sm:$0xff]
        %v313 = vld [vmem:[%s221 + $0x1b8] sm:$0xff]
        %v314 = vld [vmem:[%s221 + $0x1c0] sm:$0xff]
        %v315 = vld [vmem:[%s221 + $0x1c8] sm:$0xff]
        %v316 = vld [vmem:[%s221 + $0x1d0] sm:$0xff]
        %v317 = vld [vmem:[%s221 + $0x1d8] sm:$0xff]
        %v318 = vld [vmem:[%s221 + $0x1e0] sm:$0xff]
        %v319 = vld [vmem:[%s221 + $0x1e8] sm:$0xff]
        %v320 = vld [vmem:[%s221 + $0x1f0] sm:$0xff]
        %v321 = vld [vmem:[%s221 + $0x1f8] sm:$0xff]
        %v322 = vld [vmem:[#allocation5] sm:$0xff]
        %v323 = vld [vmem:[#allocation5 + $0x8] sm:$0xff]
        %v324 = vld [vmem:[#allocation5 + $0x10] sm:$0xff]
        %v325 = vld [vmem:[#allocation5 + $0x18] sm:$0xff]
        %v326 = vld [vmem:[#allocation5 + $0x20] sm:$0xff]
        %v327 = vld [vmem:[#allocation5 + $0x28] sm:$0xff]
        %v328 = vld [vmem:[#allocation5 + $0x30] sm:$0xff]
        %v329 = vld [vmem:[#allocation5 + $0x38] sm:$0xff]
        %v330 = vld [vmem:[#allocation5 + $0x40] sm:$0xff]
        %v331 = vld [vmem:[#allocation5 + $0x48] sm:$0xff]
        %v332 = vld [vmem:[#allocation5 + $0x50] sm:$0xff]
        %v333 = vld [vmem:[#allocation5 + $0x58] sm:$0xff]
        %v334 = vld [vmem:[#allocation5 + $0x60] sm:$0xff]
        %v335 = vld [vmem:[#allocation5 + $0x68] sm:$0xff]
        %v336 = vld [vmem:[#allocation5 + $0x70] sm:$0xff]
        %v337 = vld [vmem:[#allocation5 + $0x78] sm:$0xff]
        %v338 = vld [vmem:[%s256] sm:$0x1]
        %v340 = vperm.slane %v338, 0
        %342 = vmatpush.msra.mxu0 %v337
        %343 = vmatpush.msra.mxu0 %v336
        %344 = vmatpush.msra.mxu0 %v335
        %345 = vmatpush.msra.mxu0 %v334
        %346 = vmatpush.msra.mxu0 %v333
        %347 = vmatpush.msra.mxu0 %v332
        %348 = vmatpush.msra.mxu0 %v331
        %349 = vmatpush.msra.mxu0 %v330
        %350 = vmatpush.msra.mxu0 %v329
        %351 = vmatpush.msra.mxu0 %v328
        %352 = vmatpush.msra.mxu0 %v327
        %353 = vmatpush.msra.mxu0 %v326
        %354 = vmatpush.msra.mxu0 %v325
        %355 = vmatpush.msra.mxu0 %v324
        %356 = vmatpush.msra.mxu0 %v323
        %357 = vmatpush.msra.mxu0 %v322
        %358 = vmatmul.f32.gmra.mxu0 %v258
        %v359 = vpop.f32.mrf.mxu0
        %v360 = vadd.f32 %v340, %v359
        %361 = vmatmul.f32.gmra.mxu0 %v259
        %v362 = vpop.f32.mrf.mxu0
        %v363 = vadd.f32 %v340, %v362
        %364 = vmatmul.f32.gmra.mxu0 %v260
        %v365 = vpop.f32.mrf.mxu0
        %v366 = vadd.f32 %v340, %v365
        %367 = vmatmul.f32.gmra.mxu0 %v261
        %v368 = vpop.f32.mrf.mxu0
        %v369 = vadd.f32 %v340, %v368
        %370 = vmatmul.f32.gmra.mxu0 %v262
        %v371 = vpop.f32.mrf.mxu0
        %v372 = vadd.f32 %v340, %v371
        %373 = vmatmul.f32.gmra.mxu0 %v263
        %v374 = vpop.f32.mrf.mxu0
        %v375 = vadd.f32 %v340, %v374
        %376 = vmatmul.f32.gmra.mxu0 %v264
        %v377 = vpop.f32.mrf.mxu0
        %v378 = vadd.f32 %v340, %v377
        %379 = vmatmul.f32.gmra.mxu0 %v265
        %v380 = vpop.f32.mrf.mxu0
        %v381 = vadd.f32 %v340, %v380
        %382 = vmatmul.f32.gmra.mxu0 %v266
        %v383 = vpop.f32.mrf.mxu0
        %v384 = vadd.f32 %v340, %v383
        %385 = vmatmul.f32.gmra.mxu0 %v267
        %v386 = vpop.f32.mrf.mxu0
        %v387 = vadd.f32 %v340, %v386
        %388 = vmatmul.f32.gmra.mxu0 %v268
        %v389 = vpop.f32.mrf.mxu0
        %v390 = vadd.f32 %v340, %v389
        %391 = vmatmul.f32.gmra.mxu0 %v269
        %v392 = vpop.f32.mrf.mxu0
        %v393 = vadd.f32 %v340, %v392
        %394 = vmatmul.f32.gmra.mxu0 %v270
        %v395 = vpop.f32.mrf.mxu0
        %v396 = vadd.f32 %v340, %v395
        %397 = vmatmul.f32.gmra.mxu0 %v271
        %v398 = vpop.f32.mrf.mxu0
        %v399 = vadd.f32 %v340, %v398
        %400 = vmatmul.f32.gmra.mxu0 %v272
        %v401 = vpop.f32.mrf.mxu0
        %v402 = vadd.f32 %v340, %v401
        %403 = vmatmul.f32.gmra.mxu0 %v273
        %v404 = vpop.f32.mrf.mxu0
        %v405 = vadd.f32 %v340, %v404
        %406 = vmatmul.f32.gmra.mxu0 %v274
        %v407 = vpop.f32.mrf.mxu0
        %v408 = vadd.f32 %v340, %v407
        %409 = vmatmul.f32.gmra.mxu0 %v275
        %v410 = vpop.f32.mrf.mxu0
        %v411 = vadd.f32 %v340, %v410
        %412 = vmatmul.f32.gmra.mxu0 %v276
        %v413 = vpop.f32.mrf.mxu0
        %v414 = vadd.f32 %v340, %v413
        %415 = vmatmul.f32.gmra.mxu0 %v277
        %v416 = vpop.f32.mrf.mxu0
        %v417 = vadd.f32 %v340, %v416
        %418 = vmatmul.f32.gmra.mxu0 %v278
        %v419 = vpop.f32.mrf.mxu0
        %v420 = vadd.f32 %v340, %v419
        %421 = vmatmul.f32.gmra.mxu0 %v279
        %v422 = vpop.f32.mrf.mxu0
        %v423 = vadd.f32 %v340, %v422
        %424 = vmatmul.f32.gmra.mxu0 %v280
        %v425 = vpop.f32.mrf.mxu0
        %v426 = vadd.f32 %v340, %v425
        %427 = vmatmul.f32.gmra.mxu0 %v281
        %v428 = vpop.f32.mrf.mxu0
        %v429 = vadd.f32 %v340, %v428
        %430 = vmatmul.f32.gmra.mxu0 %v282
        %v431 = vpop.f32.mrf.mxu0
        %v432 = vadd.f32 %v340, %v431
        %433 = vmatmul.f32.gmra.mxu0 %v283
        %v434 = vpop.f32.mrf.mxu0
        %v435 = vadd.f32 %v340, %v434
        %436 = vmatmul.f32.gmra.mxu0 %v284
        %v437 = vpop.f32.mrf.mxu0
        %v438 = vadd.f32 %v340, %v437
        %439 = vmatmul.f32.gmra.mxu0 %v285
        %v440 = vpop.f32.mrf.mxu0
        %v441 = vadd.f32 %v340, %v440
        %442 = vmatmul.f32.gmra.mxu0 %v286
        %v443 = vpop.f32.mrf.mxu0
        %v444 = vadd.f32 %v340, %v443
        %445 = vmatmul.f32.gmra.mxu0 %v287
        %v446 = vpop.f32.mrf.mxu0
        %v447 = vadd.f32 %v340, %v446
        %448 = vmatmul.f32.gmra.mxu0 %v288
        %v449 = vpop.f32.mrf.mxu0
        %v450 = vadd.f32 %v340, %v449
        %451 = vmatmul.f32.gmra.mxu0 %v289
        %v452 = vpop.f32.mrf.mxu0
        %v453 = vadd.f32 %v340, %v452
        %454 = vmatmul.f32.gmra.mxu0 %v290
        %v455 = vpop.f32.mrf.mxu0
        %v456 = vadd.f32 %v340, %v455
        %457 = vmatmul.f32.gmra.mxu0 %v291
        %v458 = vpop.f32.mrf.mxu0
        %v459 = vadd.f32 %v340, %v458
        %460 = vmatmul.f32.gmra.mxu0 %v292
        %v461 = vpop.f32.mrf.mxu0
        %v462 = vadd.f32 %v340, %v461
        %463 = vmatmul.f32.gmra.mxu0 %v293
        %v464 = vpop.f32.mrf.mxu0
        %v465 = vadd.f32 %v340, %v464
        %466 = vmatmul.f32.gmra.mxu0 %v294
        %v467 = vpop.f32.mrf.mxu0
        %v468 = vadd.f32 %v340, %v467
        %469 = vmatmul.f32.gmra.mxu0 %v295
        %v470 = vpop.f32.mrf.mxu0
        %v471 = vadd.f32 %v340, %v470
        %472 = vmatmul.f32.gmra.mxu0 %v296
        %v473 = vpop.f32.mrf.mxu0
        %v474 = vadd.f32 %v340, %v473
        %475 = vmatmul.f32.gmra.mxu0 %v297
        %v476 = vpop.f32.mrf.mxu0
        %v477 = vadd.f32 %v340, %v476
        %478 = vmatmul.f32.gmra.mxu0 %v298
        %v479 = vpop.f32.mrf.mxu0
        %v480 = vadd.f32 %v340, %v479
        %481 = vmatmul.f32.gmra.mxu0 %v299
        %v482 = vpop.f32.mrf.mxu0
        %v483 = vadd.f32 %v340, %v482
        %484 = vmatmul.f32.gmra.mxu0 %v300
        %v485 = vpop.f32.mrf.mxu0
        %v486 = vadd.f32 %v340, %v485
        %487 = vmatmul.f32.gmra.mxu0 %v301
        %v488 = vpop.f32.mrf.mxu0
        %v489 = vadd.f32 %v340, %v488
        %490 = vmatmul.f32.gmra.mxu0 %v302
        %v491 = vpop.f32.mrf.mxu0
        %v492 = vadd.f32 %v340, %v491
        %493 = vmatmul.f32.gmra.mxu0 %v303
        %v494 = vpop.f32.mrf.mxu0
        %v495 = vadd.f32 %v340, %v494
        %496 = vmatmul.f32.gmra.mxu0 %v304
        %v497 = vpop.f32.mrf.mxu0
        %v498 = vadd.f32 %v340, %v497
        %499 = vmatmul.f32.gmra.mxu0 %v305
        %v500 = vpop.f32.mrf.mxu0
        %v501 = vadd.f32 %v340, %v500
        %502 = vmatmul.f32.gmra.mxu0 %v306
        %v503 = vpop.f32.mrf.mxu0
        %v504 = vadd.f32 %v340, %v503
        %505 = vmatmul.f32.gmra.mxu0 %v307
        %v506 = vpop.f32.mrf.mxu0
        %v507 = vadd.f32 %v340, %v506
        %508 = vmatmul.f32.gmra.mxu0 %v308
        %v509 = vpop.f32.mrf.mxu0
        %v510 = vadd.f32 %v340, %v509
        %511 = vmatmul.f32.gmra.mxu0 %v309
        %v512 = vpop.f32.mrf.mxu0
        %v513 = vadd.f32 %v340, %v512
        %514 = vmatmul.f32.gmra.mxu0 %v310
        %v515 = vpop.f32.mrf.mxu0
        %v516 = vadd.f32 %v340, %v515
        %517 = vmatmul.f32.gmra.mxu0 %v311
        %v518 = vpop.f32.mrf.mxu0
        %v519 = vadd.f32 %v340, %v518
        %520 = vmatmul.f32.gmra.mxu0 %v312
        %v521 = vpop.f32.mrf.mxu0
        %v522 = vadd.f32 %v340, %v521
        %523 = vmatmul.f32.gmra.mxu0 %v313
        %v524 = vpop.f32.mrf.mxu0
        %v525 = vadd.f32 %v340, %v524
        %526 = vmatmul.f32.gmra.mxu0 %v314
        %v527 = vpop.f32.mrf.mxu0
        %v528 = vadd.f32 %v340, %v527
        %529 = vmatmul.f32.gmra.mxu0 %v315
        %v530 = vpop.f32.mrf.mxu0
        %v531 = vadd.f32 %v340, %v530
        %532 = vmatmul.f32.gmra.mxu0 %v316
        %v533 = vpop.f32.mrf.mxu0
        %v534 = vadd.f32 %v340, %v533
        %535 = vmatmul.f32.gmra.mxu0 %v317
        %v536 = vpop.f32.mrf.mxu0
        %v537 = vadd.f32 %v340, %v536
        %538 = vmatmul.f32.gmra.mxu0 %v318
        %v539 = vpop.f32.mrf.mxu0
        %v540 = vadd.f32 %v340, %v539
        %541 = vmatmul.f32.gmra.mxu0 %v319
        %v542 = vpop.f32.mrf.mxu0
        %v543 = vadd.f32 %v340, %v542
        %544 = vmatmul.f32.gmra.mxu0 %v320
        %v545 = vpop.f32.mrf.mxu0
        %v546 = vadd.f32 %v340, %v545
        %547 = vmatmul.f32.gmra.mxu0 %v321
        %v548 = vpop.f32.mrf.mxu0
        %v549 = vadd.f32 %v340, %v548
        %550 = vdwg.mxu0
        %551 = vst [vmem:[%s252] sm:$0xff] %v360
        %552 = vst [vmem:[%s252 + $0x8] sm:$0xff] %v363
        %553 = vst [vmem:[%s252 + $0x10] sm:$0xff] %v366
        %554 = vst [vmem:[%s252 + $0x18] sm:$0xff] %v369
        %555 = vst [vmem:[%s252 + $0x20] sm:$0xff] %v372
        %556 = vst [vmem:[%s252 + $0x28] sm:$0xff] %v375
        %557 = vst [vmem:[%s252 + $0x30] sm:$0xff] %v378
        %558 = vst [vmem:[%s252 + $0x38] sm:$0xff] %v381
        %559 = vst [vmem:[%s252 + $0x40] sm:$0xff] %v384
        %560 = vst [vmem:[%s252 + $0x48] sm:$0xff] %v387
        %561 = vst [vmem:[%s252 + $0x50] sm:$0xff] %v390
        %562 = vst [vmem:[%s252 + $0x58] sm:$0xff] %v393
        %563 = vst [vmem:[%s252 + $0x60] sm:$0xff] %v396
        %564 = vst [vmem:[%s252 + $0x68] sm:$0xff] %v399
        %565 = vst [vmem:[%s252 + $0x70] sm:$0xff] %v402
        %566 = vst [vmem:[%s252 + $0x78] sm:$0xff] %v405
        %567 = vst [vmem:[%s252 + $0x80] sm:$0xff] %v408
        %568 = vst [vmem:[%s252 + $0x88] sm:$0xff] %v411
        %569 = vst [vmem:[%s252 + $0x90] sm:$0xff] %v414
        %570 = vst [vmem:[%s252 + $0x98] sm:$0xff] %v417
        %571 = vst [vmem:[%s252 + $0xa0] sm:$0xff] %v420
        %572 = vst [vmem:[%s252 + $0xa8] sm:$0xff] %v423
        %573 = vst [vmem:[%s252 + $0xb0] sm:$0xff] %v426
        %574 = vst [vmem:[%s252 + $0xb8] sm:$0xff] %v429
        %575 = vst [vmem:[%s252 + $0xc0] sm:$0xff] %v432
        %576 = vst [vmem:[%s252 + $0xc8] sm:$0xff] %v435
        %577 = vst [vmem:[%s252 + $0xd0] sm:$0xff] %v438
        %578 = vst [vmem:[%s252 + $0xd8] sm:$0xff] %v441
        %579 = vst [vmem:[%s252 + $0xe0] sm:$0xff] %v444
        %580 = vst [vmem:[%s252 + $0xe8] sm:$0xff] %v447
        %581 = vst [vmem:[%s252 + $0xf0] sm:$0xff] %v450
        %582 = vst [vmem:[%s252 + $0xf8] sm:$0xff] %v453
        %583 = vst [vmem:[%s252 + $0x100] sm:$0xff] %v456
        %584 = vst [vmem:[%s252 + $0x108] sm:$0xff] %v459
        %585 = vst [vmem:[%s252 + $0x110] sm:$0xff] %v462
        %586 = vst [vmem:[%s252 + $0x118] sm:$0xff] %v465
        %587 = vst [vmem:[%s252 + $0x120] sm:$0xff] %v468
        %588 = vst [vmem:[%s252 + $0x128] sm:$0xff] %v471
        %589 = vst [vmem:[%s252 + $0x130] sm:$0xff] %v474
        %590 = vst [vmem:[%s252 + $0x138] sm:$0xff] %v477
        %591 = vst [vmem:[%s252 + $0x140] sm:$0xff] %v480
        %592 = vst [vmem:[%s252 + $0x148] sm:$0xff] %v483
        %593 = vst [vmem:[%s252 + $0x150] sm:$0xff] %v486
        %594 = vst [vmem:[%s252 + $0x158] sm:$0xff] %v489
        %595 = vst [vmem:[%s252 + $0x160] sm:$0xff] %v492
        %596 = vst [vmem:[%s252 + $0x168] sm:$0xff] %v495
        %597 = vst [vmem:[%s252 + $0x170] sm:$0xff] %v498
        %598 = vst [vmem:[%s252 + $0x178] sm:$0xff] %v501
        %599 = vst [vmem:[%s252 + $0x180] sm:$0xff] %v504
        %600 = vst [vmem:[%s252 + $0x188] sm:$0xff] %v507
        %601 = vst [vmem:[%s252 + $0x190] sm:$0xff] %v510
        %602 = vst [vmem:[%s252 + $0x198] sm:$0xff] %v513
        %603 = vst [vmem:[%s252 + $0x1a0] sm:$0xff] %v516
        %604 = vst [vmem:[%s252 + $0x1a8] sm:$0xff] %v519
        %605 = vst [vmem:[%s252 + $0x1b0] sm:$0xff] %v522
        %606 = vst [vmem:[%s252 + $0x1b8] sm:$0xff] %v525
        %607 = vst [vmem:[%s252 + $0x1c0] sm:$0xff] %v528
        %608 = vst [vmem:[%s252 + $0x1c8] sm:$0xff] %v531
        %609 = vst [vmem:[%s252 + $0x1d0] sm:$0xff] %v534
        %610 = vst [vmem:[%s252 + $0x1d8] sm:$0xff] %v537
        %611 = vst [vmem:[%s252 + $0x1e0] sm:$0xff] %v540
        %612 = vst [vmem:[%s252 + $0x1e8] sm:$0xff] %v543
        %613 = vst [vmem:[%s252 + $0x1f0] sm:$0xff] %v546
        %614 = vst [vmem:[%s252 + $0x1f8] sm:$0xff] %v549
        %s615 = sand.u32 %s132, 1
        %s616 = scalar_lea.sflag [#allocation4], %s615
        %s617 = sand.u32 %s132, 1
        %s618 = smul.addr %s617, 512
        %s619 = scalar_lea.vmem [#allocation7], %s618
        // Predicated region
        $region41: #{tpu_custom_call.1} parent=31 // pred_check
          %p620 = pneg %p142
        $region42: #{tpu_custom_call.1} parent=31 // pred_check_branch
          %622 = sbr.rel (%p620) target = $region44
        $region43: #{tpu_custom_call.1} parent=31 // pred_region
          %s623 = smul.u32 64, %s27
          %625 = vsyncadd %s616, 0
          %s626 = sadd.s32 %s28, %s623
          %s627 = smul.addr %s26, 64
          %s628 = sadd.s32 %s626, %s627
          %s629 = smul.addr %s628, 8
          %s630 = scalar_lea.hbm %s3, %s629
          %s631 = sshll.u32 %s619, 4
          %s632 = int_to_ptr.vmem [resolvable:$true] %s631
          %s633 = sshll.u32 %s630, 4
          %s634 = int_to_ptr.hbm [resolvable:$true] %s633
          %639 = dma.vmem_to_hbm [thread:$0]  %s632, 8192, %s634, %s616, 128, 128, 8
        $region44: #{tpu_custom_call.1} parent=31 // pred_fallthru
          _
      $region32: #{tpu_custom_call.1} parent=5 // pred_fallthru
        _
      %p640 = scmp.le.s32.totalorder 2, %s16
      // Predicated region
      $region45: #{tpu_custom_call.1} parent=5 // pred_check
        %p641 = pneg %p640
      $region46: #{tpu_custom_call.1} parent=5 // pred_check_branch
        %643 = sbr.rel (%p641) target = $region48
      $region47: #{tpu_custom_call.1} parent=5 // pred_region
        %s644 = ssub.s32 %s16, 2
        // Predicated region
        $region49: #{tpu_custom_call.1} parent=47 // pred_check
          %p645 = pneg %p148
        $region50: #{tpu_custom_call.1} parent=47 // pred_check_branch
          %647 = sbr.rel (%p645) target = $region52
        $region51: #{tpu_custom_call.1} parent=47 // pred_region
          %s648 = sand.u32 %s133, 1
          %s649 = scalar_lea.sflag [#allocation4], %s648
          %s650 = sand.u32 %s133, 1
          %s651 = smul.addr %s650, 512
          %s652 = scalar_lea.vmem [#allocation7], %s651
          %654 = dma.done %s649, 8192
        $region52: #{tpu_custom_call.1} parent=47 // pred_fallthru
          _
      $region48: #{tpu_custom_call.1} parent=5 // pred_fallthru
        _
    $region6: #{tpu_custom_call.1} parent=1 // loop_footer
      %s20 = sadd.s32 1, %s16
    $region7: #{tpu_custom_call.1} parent=1 // loop_footer_branch
      %15 = sbr.rel target = $region3
    $region8: #{tpu_custom_call.1} parent=1 // loop_exit
      _
    %655 = vsyncpa [#allocation3], 1
    %s656 = scalar_lea.sflag [#allocation3], 1
    %657 = vsyncpa %s656, 1
    %658 = vsyncpa [#allocation6], 1
    %659 = vsyncpa [#allocation4], 1
    %s660 = scalar_lea.sflag [#allocation4], 1
    %661 = vsyncpa %s660, 1

</llo_original>
